<compile_context>
chip_gen: v5e
topology: v5e:2x2
jax: 0.10.0
libtpu: 0.0.40
codegen_flags: <defaults>
</compile_context>

<pallas_src>
import functools

import jax
import jax.numpy as jnp
from jax.experimental import pallas as pl
from jax.experimental.pallas import tpu as pltpu


def _gelu(x, approximate):
    if approximate:
        # tanh GELU: tanh lands on the EUP slot; only a handful of VALU ops
        # per element remain (vs ~25-30 for the exact erf polynomial).
        return jax.nn.gelu(x, approximate=True)
    # exact (erf) GELU == torch nn.GELU() default — kept as the parity path.
    return 0.5 * x * (1.0 + jax.lax.erf(x * (2.0 ** -0.5)))


def _selection_kernel(src_ref, tgt_ref, clf_ref, out_ref, acc_ref, *,
                      approximate, rows):
    # src_ref: [1, 1, ts, hc]   (source rows on sublanes, H-chunk on lanes)
    # tgt_ref: [1, 1, tt, hc]   (target rows on sublanes, H-chunk on lanes)
    # clf_ref: [1, 1, hc]
    # out_ref: [1, 1, ts, tt]   (T lane-dense)
    # acc_ref: [ts, tt] f32 VMEM scratch, reduction over the H-chunk grid axis.
    k = pl.program_id(4)

    @pl.when(k == 0)
    def _():
        acc_ref[...] = jnp.zeros_like(acc_ref)

    t_blk = tgt_ref[0, 0]                      # [tt, hc], loop invariant
    c_row = clf_ref[0]                         # [1, hc],  loop invariant

    def row_body(i, carry):
        # One source row at a time: the live slab is [tt, hc] (fits in vregs,
        # nothing spills through the vst slot).
        s_row = src_ref[0, 0, pl.ds(i, 1), :]                 # [1, hc]
        slab = _gelu(s_row + t_blk, approximate)              # [tt, hc]
        # TODO(synk): dropout is identity (inference mode); no RNG mask applied.
        # Classifier-weighted H reduction on the MXU: c[1,hc] @ slab^T -> [1,tt]
        # (result is already lane-dense, so the accumulator-row store needs no
        # cross-lane relayout).
        r = jax.lax.dot_general(
            c_row, slab, (((1,), (1,)), ((), ())),
            preferred_element_type=jnp.float32)               # [1, tt]
        acc_ref[pl.ds(i, 1), :] = acc_ref[pl.ds(i, 1), :] + r
        return carry

    jax.lax.fori_loop(0, rows, row_body, 0, unroll=min(8, rows))

    @pl.when(k == pl.num_programs(4) - 1)
    def _():
        out_ref[0, 0] = acc_ref[...].astype(out_ref.dtype)


def _pick_h_chunk(H):
    # Lane-dense contraction slice; 128 keeps the per-row [tt, hc] slab small.
    if H >= 128 and H % 128 == 0:
        return 128
    return H


def lora_relation_head(pooled, w_src, b_src, w_tgt, b_tgt,
                       da_src, db_src, da_tgt, db_tgt, classifier,
                       *, ts=None, tt=None, approximate_gelu=True):
    B, S, H = pooled.shape
    L = classifier.shape[1]

    # ---- Stage 1 (XLA): projections + rank-R LoRA deltas -> [B, L, S, H] ----
    # Rank-R path: H/R x fewer MXU flops than folding delta=[H,H,L] and the
    # folded weights never exist in HBM.
    h_src = pooled @ w_src.T + b_src                        # [B, S, H]
    h_tgt = pooled @ w_tgt.T + b_tgt                        # [B, T, H]
    tmp_s = jnp.einsum("bsh,hrl->bsrl", pooled, da_src)     # [B, S, R, L]
    d_src = jnp.einsum("bsrl,rhl->blsh", tmp_s, db_src)     # [B, L, S, H]
    tmp_t = jnp.einsum("bth,hrl->btrl", pooled, da_tgt)     # [B, T, R, L]
    d_tgt = jnp.einsum("btrl,rhl->blth", tmp_t, db_tgt)     # [B, L, T, H]
    source = h_src[:, None, :, :] + d_src                   # [B, L, S, H]
    target = h_tgt[:, None, :, :] + d_tgt                   # [B, L, T, H]
    clf = classifier.T[:, None, :]                          # [L, 1, H]

    # ---- Stage 2 (Pallas): tiled S x T add + GELU + weighted H reduction ----
    if ts is None:
        ts = S if S <= 256 else 256        # source rows per grid step (sublanes)
    if tt is None:
        tt = S if S < 128 else 128         # lane-dense target tile (T last in out)
    hc = _pick_h_chunk(H)

    grid = (B, L, pl.cdiv(S, ts), pl.cdiv(S, tt), pl.cdiv(H, hc))

    out_blst = pl.pallas_call(
        functools.partial(_selection_kernel, approximate=approximate_gelu,
                          rows=ts),
        out_shape=jax.ShapeDtypeStruct((B, L, S, S), pooled.dtype),
        grid=grid,
        in_specs=[
            pl.BlockSpec((1, 1, ts, hc), lambda b, l, si, ti, k: (b, l, si, k)),
            pl.BlockSpec((1, 1, tt, hc), lambda b, l, si, ti, k: (b, l, ti, k)),
            pl.BlockSpec((1, 1, hc), lambda b, l, si, ti, k: (l, 0, k)),
        ],
        out_specs=pl.BlockSpec((1, 1, ts, tt),
                               lambda b, l, si, ti, k: (b, l, si, ti)),
        scratch_shapes=[pltpu.VMEM((ts, tt), jnp.float32)],
        compiler_params=pltpu.CompilerParams(
            dimension_semantics=("parallel", "parallel", "parallel", "parallel",
                                 "arbitrary"),
        ),
    )(source, target, clf)

    # Back to torch's 'bstl'.  TODO(synk): skip this transpose if the consumer
    # can accept the 'blst' layout (saves one HBM round trip of the output).
    return jnp.transpose(out_blst, (0, 2, 3, 1))


def reference(pooled, w_src, b_src, w_tgt, b_tgt,
              da_src, db_src, da_tgt, db_tgt, classifier,
              approximate_gelu=False):
    # Direct transcription of the PyTorch module (folded-delta formulation).
    h_source = pooled @ w_src.T + b_src
    h_target = pooled @ w_tgt.T + b_tgt
    delta_s = jnp.einsum("hrl,ril->hil", da_src, db_src)
    delta_t = jnp.einsum("hrl,ril->hil", da_tgt, db_tgt)
    ds_out = jnp.einsum("bsh,hil->bsli", pooled, delta_s)
    dt_out = jnp.einsum("bsh,hil->bsli", pooled, delta_t)
    source = h_source[:, :, None, :] + ds_out
    target = h_target[:, :, None, :] + dt_out
    hidden = _gelu(source[:, :, None, :, :] + target[:, None, :, :, :],
                   approximate_gelu)
    return jnp.einsum("bstlh,hl->bstl", hidden, classifier)


def _make_inputs(key, B, S, H, L, R, dtype=jnp.float32):
    ks = jax.random.split(key, 10)
    scale = 1.0 / (H ** 0.5)
    pooled = jax.random.normal(ks[0], (B, S, H), dtype)
    w_src = jax.random.normal(ks[1], (H, H), dtype) * scale
    b_src = jax.random.normal(ks[2], (H,), dtype) * 0.1
    w_tgt = jax.random.normal(ks[3], (H, H), dtype) * scale
    b_tgt = jax.random.normal(ks[4], (H,), dtype) * 0.1
    # NOTE: PyTorch inits dense_b to zeros (LoRA delta == 0 at init); we use
    # small nonzero values so the LoRA path is actually exercised.
    da_src = jax.random.normal(ks[5], (H, R, L), dtype) * scale
    db_src = jax.random.normal(ks[6], (R, H, L), dtype) * scale
    da_tgt = jax.random.normal(ks[7], (H, R, L), dtype) * scale
    db_tgt = jax.random.normal(ks[8], (R, H, L), dtype) * scale
    classifier = jax.random.normal(ks[9], (H, L), dtype) * scale
    return (pooled, w_src, b_src, w_tgt, b_tgt,
            da_src, db_src, da_tgt, db_tgt, classifier)


if __name__ == "__main__":
    key = jax.random.PRNGKey(0)

    # --- small shape: parity check for both GELU flavours ---
    args = _make_inputs(jax.random.fold_in(key, 0), B=2, S=8, H=32, L=4, R=4)

    out = jax.block_until_ready(lora_relation_head(*args))      # tanh GELU (default)
    ref = reference(*args, approximate_gelu=True)
    assert out.shape == (2, 8, 8, 4), out.shape
    assert jnp.allclose(out, ref, atol=2e-3, rtol=2e-3), \
        float(jnp.max(jnp.abs(out - ref)))

    out_exact = jax.block_until_ready(
        lora_relation_head(*args, approximate_gelu=False))      # exact erf (torch parity)
    ref_exact = reference(*args, approximate_gelu=False)
    assert jnp.allclose(out_exact, ref_exact, atol=2e-3, rtol=2e-3), \
        float(jnp.max(jnp.abs(out_exact - ref_exact)))

    # --- larger shape: exercises S/T tiling, a partial T edge tile and the
    #     multi-step H-chunk accumulation path ---
    args2 = _make_inputs(jax.random.fold_in(key, 1), B=1, S=136, H=256, L=2, R=4)
    out2 = jax.block_until_ready(lora_relation_head(*args2))
    ref2 = reference(*args2, approximate_gelu=True)
    assert out2.shape == (1, 136, 136, 2), out2.shape
    assert jnp.allclose(out2, ref2, atol=2e-3, rtol=2e-3), \
        float(jnp.max(jnp.abs(out2 - ref2)))

    print("KERNEL_OK")
</pallas_src>

<mosaic_0001>
module attributes {stable_mosaic.version = 11 : i64} {
  func.func @_selection_kernel(%arg0: i32, %arg1: i32, %arg2: i32, %arg3: i32, %arg4: i32, %arg5: memref<1x1x8x32xf32, #tpu.memory_space<vmem>>, %arg6: memref<1x1x8x32xf32, #tpu.memory_space<vmem>>, %arg7: memref<1x1x32xf32, #tpu.memory_space<vmem>>, %arg8: memref<1x1x8x8xf32, #tpu.memory_space<vmem>>, %arg9: memref<8x8xf32, #tpu.memory_space<vmem>>) attributes {dimension_semantics = [#tpu.dimension_semantics<parallel>, #tpu.dimension_semantics<parallel>, #tpu.dimension_semantics<parallel>, #tpu.dimension_semantics<parallel>, #tpu.dimension_semantics<arbitrary>], iteration_bounds = array<i64: 2, 4, 1, 1, 1>, scalar_prefetch = 0 : i64, scratch_operands = 1 : i64, tpu.core_type = #tpu.core_type<tc>, window_params = [{transform_indices = @transform_0, window_bounds = array<i64: 1, 1, 8, 32>}, {transform_indices = @transform_1, window_bounds = array<i64: 1, 1, 8, 32>}, {transform_indices = @transform_2, window_bounds = array<i64: 1, 1, 32>}, {transform_indices = @transform_3, window_bounds = array<i64: 1, 1, 8, 8>}]} {
    %c0_i32 = arith.constant 0 : i32
    %0 = arith.cmpi eq, %arg4, %c0_i32 : i32
    %1 = arith.extui %0 : i1 to i32
    %c0_i32_0 = arith.constant 0 : i32
    %2 = arith.cmpi ne, %1, %c0_i32_0 : i32
    scf.if %2 {
      %cst_89 = arith.constant 0.000000e+00 : f32
      %202 = vector.broadcast %cst_89 : f32 to vector<8x8xf32>
      %c0_90 = arith.constant 0 : index
      %c0_91 = arith.constant 0 : index
      %203 = vector.load %arg9[%c0_90, %c0_91] : memref<8x8xf32, #tpu.memory_space<vmem>>, vector<8x8xf32>
      tpu.vector_store %arg9[%c0_90, %c0_91], %202 {strides = array<i32>} : memref<8x8xf32, #tpu.memory_space<vmem>>, vector<8x8xf32>,
    } else {
    }
    %c0 = arith.constant 0 : index
    %c0_1 = arith.constant 0 : index
    %c0_2 = arith.constant 0 : index
    %c0_3 = arith.constant 0 : index
    %3 = vector.load %arg6[%c0, %c0_1, %c0_2, %c0_3] : memref<1x1x8x32xf32, #tpu.memory_space<vmem>>, vector<1x1x8x32xf32>
    %4 = vector.shape_cast %3 : vector<1x1x8x32xf32> to vector<8x32xf32>
    %c0_4 = arith.constant 0 : index
    %c0_5 = arith.constant 0 : index
    %c0_6 = arith.constant 0 : index
    %5 = vector.load %arg7[%c0_4, %c0_5, %c0_6] : memref<1x1x32xf32, #tpu.memory_space<vmem>>, vector<1x1x32xf32>
    %6 = vector.shape_cast %5 : vector<1x1x32xf32> to vector<1x32xf32>
    %c0_i32_7 = arith.constant 0 : i32
    %c0_8 = arith.constant 0 : index
    %c0_9 = arith.constant 0 : index
    %7 = arith.index_cast %c0_i32_7 : i32 to index
    %c0_10 = arith.constant 0 : index
    %8 = vector.load %arg5[%c0_8, %c0_9, %7, %c0_10] : memref<1x1x8x32xf32, #tpu.memory_space<vmem>>, vector<1x1x1x32xf32>
    %9 = vector.shape_cast %8 : vector<1x1x1x32xf32> to vector<1x32xf32>
    %10 = vector.broadcast %9 : vector<1x32xf32> to vector<8x32xf32>
    %11 = arith.addf %10, %4 : vector<8x32xf32>
    %12 = arith.mulf %11, %11 : vector<8x32xf32>
    %13 = arith.mulf %11, %12 : vector<8x32xf32>
    %cst = arith.constant 4.471500e-02 : f32
    %14 = vector.broadcast %cst : f32 to vector<8x32xf32>
    %15 = arith.mulf %14, %13 : vector<8x32xf32>
    %16 = arith.addf %11, %15 : vector<8x32xf32>
    %cst_11 = arith.constant 0.797884583 : f32
    %17 = vector.broadcast %cst_11 : f32 to vector<8x32xf32>
    %18 = arith.mulf %17, %16 : vector<8x32xf32>
    %19 = math.tanh %18 : vector<8x32xf32>
    %cst_12 = arith.constant 1.000000e+00 : f32
    %20 = vector.broadcast %cst_12 : f32 to vector<8x32xf32>
    %21 = arith.addf %20, %19 : vector<8x32xf32>
    %cst_13 = arith.constant 5.000000e-01 : f32
    %22 = vector.broadcast %cst_13 : f32 to vector<8x32xf32>
    %23 = arith.mulf %22, %21 : vector<8x32xf32>
    %24 = arith.mulf %11, %23 : vector<8x32xf32>
    %cst_14 = arith.constant dense<0.000000e+00> : vector<1x8xf32>
    %25 = tpu.matmul %6, %24, %cst_14 {dimension_numbers = #tpu.dot_dimension_numbers<[1], [1], [0], [0], [0, 0, 1, 0], [], []>} : vector<1x32xf32>, vector<8x32xf32>, vector<1x8xf32> -> vector<1x8xf32>
    %26 = arith.index_cast %c0_i32_7 : i32 to index
    %c0_15 = arith.constant 0 : index
    %27 = vector.load %arg9[%26, %c0_15] : memref<8x8xf32, #tpu.memory_space<vmem>>, vector<1x8xf32>
    %28 = arith.addf %27, %25 : vector<1x8xf32>
    %29 = arith.index_cast %c0_i32_7 : i32 to index
    %c0_16 = arith.constant 0 : index
    %30 = vector.load %arg9[%29, %c0_16] : memref<8x8xf32, #tpu.memory_space<vmem>>, vector<1x8xf32>
    tpu.vector_store %arg9[%29, %c0_16], %28 {strides = array<i32>} : memref<8x8xf32, #tpu.memory_space<vmem>>, vector<1x8xf32>,
    %c1_i32 = arith.constant 1 : i32
    %c0_17 = arith.constant 0 : index
    %c0_18 = arith.constant 0 : index
    %31 = arith.index_cast %c1_i32 : i32 to index
    %c0_19 = arith.constant 0 : index
    %32 = vector.load %arg5[%c0_17, %c0_18, %31, %c0_19] : memref<1x1x8x32xf32, #tpu.memory_space<vmem>>, vector<1x1x1x32xf32>
    %33 = vector.shape_cast %32 : vector<1x1x1x32xf32> to vector<1x32xf32>
    %34 = vector.broadcast %33 : vector<1x32xf32> to vector<8x32xf32>
    %35 = arith.addf %34, %4 : vector<8x32xf32>
    %36 = arith.mulf %35, %35 : vector<8x32xf32>
    %37 = arith.mulf %35, %36 : vector<8x32xf32>
    %cst_20 = arith.constant 4.471500e-02 : f32
    %38 = vector.broadcast %cst_20 : f32 to vector<8x32xf32>
    %39 = arith.mulf %38, %37 : vector<8x32xf32>
    %40 = arith.addf %35, %39 : vector<8x32xf32>
    %cst_21 = arith.constant 0.797884583 : f32
    %41 = vector.broadcast %cst_21 : f32 to vector<8x32xf32>
    %42 = arith.mulf %41, %40 : vector<8x32xf32>
    %43 = math.tanh %42 : vector<8x32xf32>
    %cst_22 = arith.constant 1.000000e+00 : f32
    %44 = vector.broadcast %cst_22 : f32 to vector<8x32xf32>
    %45 = arith.addf %44, %43 : vector<8x32xf32>
    %cst_23 = arith.constant 5.000000e-01 : f32
    %46 = vector.broadcast %cst_23 : f32 to vector<8x32xf32>
    %47 = arith.mulf %46, %45 : vector<8x32xf32>
    %48 = arith.mulf %35, %47 : vector<8x32xf32>
    %cst_24 = arith.constant dense<0.000000e+00> : vector<1x8xf32>
    %49 = tpu.matmul %6, %48, %cst_24 {dimension_numbers = #tpu.dot_dimension_numbers<[1], [1], [0], [0], [0, 0, 1, 0], [], []>} : vector<1x32xf32>, vector<8x32xf32>, vector<1x8xf32> -> vector<1x8xf32>
    %50 = arith.index_cast %c1_i32 : i32 to index
    %c0_25 = arith.constant 0 : index
    %51 = vector.load %arg9[%50, %c0_25] : memref<8x8xf32, #tpu.memory_space<vmem>>, vector<1x8xf32>
    %52 = arith.addf %51, %49 : vector<1x8xf32>
    %53 = arith.index_cast %c1_i32 : i32 to index
    %c0_26 = arith.constant 0 : index
    %54 = vector.load %arg9[%53, %c0_26] : memref<8x8xf32, #tpu.memory_space<vmem>>, vector<1x8xf32>
    tpu.vector_store %arg9[%53, %c0_26], %52 {strides = array<i32>} : memref<8x8xf32, #tpu.memory_space<vmem>>, vector<1x8xf32>,
    %c2_i32 = arith.constant 2 : i32
    %c0_27 = arith.constant 0 : index
    %c0_28 = arith.constant 0 : index
    %55 = arith.index_cast %c2_i32 : i32 to index
    %c0_29 = arith.constant 0 : index
    %56 = vector.load %arg5[%c0_27, %c0_28, %55, %c0_29] : memref<1x1x8x32xf32, #tpu.memory_space<vmem>>, vector<1x1x1x32xf32>
    %57 = vector.shape_cast %56 : vector<1x1x1x32xf32> to vector<1x32xf32>
    %58 = vector.broadcast %57 : vector<1x32xf32> to vector<8x32xf32>
    %59 = arith.addf %58, %4 : vector<8x32xf32>
    %60 = arith.mulf %59, %59 : vector<8x32xf32>
    %61 = arith.mulf %59, %60 : vector<8x32xf32>
    %cst_30 = arith.constant 4.471500e-02 : f32
    %62 = vector.broadcast %cst_30 : f32 to vector<8x32xf32>
    %63 = arith.mulf %62, %61 : vector<8x32xf32>
    %64 = arith.addf %59, %63 : vector<8x32xf32>
    %cst_31 = arith.constant 0.797884583 : f32
    %65 = vector.broadcast %cst_31 : f32 to vector<8x32xf32>
    %66 = arith.mulf %65, %64 : vector<8x32xf32>
    %67 = math.tanh %66 : vector<8x32xf32>
    %cst_32 = arith.constant 1.000000e+00 : f32
    %68 = vector.broadcast %cst_32 : f32 to vector<8x32xf32>
    %69 = arith.addf %68, %67 : vector<8x32xf32>
    %cst_33 = arith.constant 5.000000e-01 : f32
    %70 = vector.broadcast %cst_33 : f32 to vector<8x32xf32>
    %71 = arith.mulf %70, %69 : vector<8x32xf32>
    %72 = arith.mulf %59, %71 : vector<8x32xf32>
    %cst_34 = arith.constant dense<0.000000e+00> : vector<1x8xf32>
    %73 = tpu.matmul %6, %72, %cst_34 {dimension_numbers = #tpu.dot_dimension_numbers<[1], [1], [0], [0], [0, 0, 1, 0], [], []>} : vector<1x32xf32>, vector<8x32xf32>, vector<1x8xf32> -> vector<1x8xf32>
    %74 = arith.index_cast %c2_i32 : i32 to index
    %c0_35 = arith.constant 0 : index
    %75 = vector.load %arg9[%74, %c0_35] : memref<8x8xf32, #tpu.memory_space<vmem>>, vector<1x8xf32>
    %76 = arith.addf %75, %73 : vector<1x8xf32>
    %77 = arith.index_cast %c2_i32 : i32 to index
    %c0_36 = arith.constant 0 : index
    %78 = vector.load %arg9[%77, %c0_36] : memref<8x8xf32, #tpu.memory_space<vmem>>, vector<1x8xf32>
    tpu.vector_store %arg9[%77, %c0_36], %76 {strides = array<i32>} : memref<8x8xf32, #tpu.memory_space<vmem>>, vector<1x8xf32>,
    %c3_i32 = arith.constant 3 : i32
    %c0_37 = arith.constant 0 : index
    %c0_38 = arith.constant 0 : index
    %79 = arith.index_cast %c3_i32 : i32 to index
    %c0_39 = arith.constant 0 : index
    %80 = vector.load %arg5[%c0_37, %c0_38, %79, %c0_39] : memref<1x1x8x32xf32, #tpu.memory_space<vmem>>, vector<1x1x1x32xf32>
    %81 = vector.shape_cast %80 : vector<1x1x1x32xf32> to vector<1x32xf32>
    %82 = vector.broadcast %81 : vector<1x32xf32> to vector<8x32xf32>
    %83 = arith.addf %82, %4 : vector<8x32xf32>
    %84 = arith.mulf %83, %83 : vector<8x32xf32>
    %85 = arith.mulf %83, %84 : vector<8x32xf32>
    %cst_40 = arith.constant 4.471500e-02 : f32
    %86 = vector.broadcast %cst_40 : f32 to vector<8x32xf32>
    %87 = arith.mulf %86, %85 : vector<8x32xf32>
    %88 = arith.addf %83, %87 : vector<8x32xf32>
    %cst_41 = arith.constant 0.797884583 : f32
    %89 = vector.broadcast %cst_41 : f32 to vector<8x32xf32>
    %90 = arith.mulf %89, %88 : vector<8x32xf32>
    %91 = math.tanh %90 : vector<8x32xf32>
    %cst_42 = arith.constant 1.000000e+00 : f32
    %92 = vector.broadcast %cst_42 : f32 to vector<8x32xf32>
    %93 = arith.addf %92, %91 : vector<8x32xf32>
    %cst_43 = arith.constant 5.000000e-01 : f32
    %94 = vector.broadcast %cst_43 : f32 to vector<8x32xf32>
    %95 = arith.mulf %94, %93 : vector<8x32xf32>
    %96 = arith.mulf %83, %95 : vector<8x32xf32>
    %cst_44 = arith.constant dense<0.000000e+00> : vector<1x8xf32>
    %97 = tpu.matmul %6, %96, %cst_44 {dimension_numbers = #tpu.dot_dimension_numbers<[1], [1], [0], [0], [0, 0, 1, 0], [], []>} : vector<1x32xf32>, vector<8x32xf32>, vector<1x8xf32> -> vector<1x8xf32>
    %98 = arith.index_cast %c3_i32 : i32 to index
    %c0_45 = arith.constant 0 : index
    %99 = vector.load %arg9[%98, %c0_45] : memref<8x8xf32, #tpu.memory_space<vmem>>, vector<1x8xf32>
    %100 = arith.addf %99, %97 : vector<1x8xf32>
    %101 = arith.index_cast %c3_i32 : i32 to index
    %c0_46 = arith.constant 0 : index
    %102 = vector.load %arg9[%101, %c0_46] : memref<8x8xf32, #tpu.memory_space<vmem>>, vector<1x8xf32>
    tpu.vector_store %arg9[%101, %c0_46], %100 {strides = array<i32>} : memref<8x8xf32, #tpu.memory_space<vmem>>, vector<1x8xf32>,
    %c4_i32 = arith.constant 4 : i32
    %c0_47 = arith.constant 0 : index
    %c0_48 = arith.constant 0 : index
    %103 = arith.index_cast %c4_i32 : i32 to index
    %c0_49 = arith.constant 0 : index
    %104 = vector.load %arg5[%c0_47, %c0_48, %103, %c0_49] : memref<1x1x8x32xf32, #tpu.memory_space<vmem>>, vector<1x1x1x32xf32>
    %105 = vector.shape_cast %104 : vector<1x1x1x32xf32> to vector<1x32xf32>
    %106 = vector.broadcast %105 : vector<1x32xf32> to vector<8x32xf32>
    %107 = arith.addf %106, %4 : vector<8x32xf32>
    %108 = arith.mulf %107, %107 : vector<8x32xf32>
    %109 = arith.mulf %107, %108 : vector<8x32xf32>
    %cst_50 = arith.constant 4.471500e-02 : f32
    %110 = vector.broadcast %cst_50 : f32 to vector<8x32xf32>
    %111 = arith.mulf %110, %109 : vector<8x32xf32>
    %112 = arith.addf %107, %111 : vector<8x32xf32>
    %cst_51 = arith.constant 0.797884583 : f32
    %113 = vector.broadcast %cst_51 : f32 to vector<8x32xf32>
    %114 = arith.mulf %113, %112 : vector<8x32xf32>
    %115 = math.tanh %114 : vector<8x32xf32>
    %cst_52 = arith.constant 1.000000e+00 : f32
    %116 = vector.broadcast %cst_52 : f32 to vector<8x32xf32>
    %117 = arith.addf %116, %115 : vector<8x32xf32>
    %cst_53 = arith.constant 5.000000e-01 : f32
    %118 = vector.broadcast %cst_53 : f32 to vector<8x32xf32>
    %119 = arith.mulf %118, %117 : vector<8x32xf32>
    %120 = arith.mulf %107, %119 : vector<8x32xf32>
    %cst_54 = arith.constant dense<0.000000e+00> : vector<1x8xf32>
    %121 = tpu.matmul %6, %120, %cst_54 {dimension_numbers = #tpu.dot_dimension_numbers<[1], [1], [0], [0], [0, 0, 1, 0], [], []>} : vector<1x32xf32>, vector<8x32xf32>, vector<1x8xf32> -> vector<1x8xf32>
    %122 = arith.index_cast %c4_i32 : i32 to index
    %c0_55 = arith.constant 0 : index
    %123 = vector.load %arg9[%122, %c0_55] : memref<8x8xf32, #tpu.memory_space<vmem>>, vector<1x8xf32>
    %124 = arith.addf %123, %121 : vector<1x8xf32>
    %125 = arith.index_cast %c4_i32 : i32 to index
    %c0_56 = arith.constant 0 : index
    %126 = vector.load %arg9[%125, %c0_56] : memref<8x8xf32, #tpu.memory_space<vmem>>, vector<1x8xf32>
    tpu.vector_store %arg9[%125, %c0_56], %124 {strides = array<i32>} : memref<8x8xf32, #tpu.memory_space<vmem>>, vector<1x8xf32>,
    %c5_i32 = arith.constant 5 : i32
    %c0_57 = arith.constant 0 : index
    %c0_58 = arith.constant 0 : index
    %127 = arith.index_cast %c5_i32 : i32 to index
    %c0_59 = arith.constant 0 : index
    %128 = vector.load %arg5[%c0_57, %c0_58, %127, %c0_59] : memref<1x1x8x32xf32, #tpu.memory_space<vmem>>, vector<1x1x1x32xf32>
    %129 = vector.shape_cast %128 : vector<1x1x1x32xf32> to vector<1x32xf32>
    %130 = vector.broadcast %129 : vector<1x32xf32> to vector<8x32xf32>
    %131 = arith.addf %130, %4 : vector<8x32xf32>
    %132 = arith.mulf %131, %131 : vector<8x32xf32>
    %133 = arith.mulf %131, %132 : vector<8x32xf32>
    %cst_60 = arith.constant 4.471500e-02 : f32
    %134 = vector.broadcast %cst_60 : f32 to vector<8x32xf32>
    %135 = arith.mulf %134, %133 : vector<8x32xf32>
    %136 = arith.addf %131, %135 : vector<8x32xf32>
    %cst_61 = arith.constant 0.797884583 : f32
    %137 = vector.broadcast %cst_61 : f32 to vector<8x32xf32>
    %138 = arith.mulf %137, %136 : vector<8x32xf32>
    %139 = math.tanh %138 : vector<8x32xf32>
    %cst_62 = arith.constant 1.000000e+00 : f32
    %140 = vector.broadcast %cst_62 : f32 to vector<8x32xf32>
    %141 = arith.addf %140, %139 : vector<8x32xf32>
    %cst_63 = arith.constant 5.000000e-01 : f32
    %142 = vector.broadcast %cst_63 : f32 to vector<8x32xf32>
    %143 = arith.mulf %142, %141 : vector<8x32xf32>
    %144 = arith.mulf %131, %143 : vector<8x32xf32>
    %cst_64 = arith.constant dense<0.000000e+00> : vector<1x8xf32>
    %145 = tpu.matmul %6, %144, %cst_64 {dimension_numbers = #tpu.dot_dimension_numbers<[1], [1], [0], [0], [0, 0, 1, 0], [], []>} : vector<1x32xf32>, vector<8x32xf32>, vector<1x8xf32> -> vector<1x8xf32>
    %146 = arith.index_cast %c5_i32 : i32 to index
    %c0_65 = arith.constant 0 : index
    %147 = vector.load %arg9[%146, %c0_65] : memref<8x8xf32, #tpu.memory_space<vmem>>, vector<1x8xf32>
    %148 = arith.addf %147, %145 : vector<1x8xf32>
    %149 = arith.index_cast %c5_i32 : i32 to index
    %c0_66 = arith.constant 0 : index
    %150 = vector.load %arg9[%149, %c0_66] : memref<8x8xf32, #tpu.memory_space<vmem>>, vector<1x8xf32>
    tpu.vector_store %arg9[%149, %c0_66], %148 {strides = array<i32>} : memref<8x8xf32, #tpu.memory_space<vmem>>, vector<1x8xf32>,
    %c6_i32 = arith.constant 6 : i32
    %c0_67 = arith.constant 0 : index
    %c0_68 = arith.constant 0 : index
    %151 = arith.index_cast %c6_i32 : i32 to index
    %c0_69 = arith.constant 0 : index
    %152 = vector.load %arg5[%c0_67, %c0_68, %151, %c0_69] : memref<1x1x8x32xf32, #tpu.memory_space<vmem>>, vector<1x1x1x32xf32>
    %153 = vector.shape_cast %152 : vector<1x1x1x32xf32> to vector<1x32xf32>
    %154 = vector.broadcast %153 : vector<1x32xf32> to vector<8x32xf32>
    %155 = arith.addf %154, %4 : vector<8x32xf32>
    %156 = arith.mulf %155, %155 : vector<8x32xf32>
    %157 = arith.mulf %155, %156 : vector<8x32xf32>
    %cst_70 = arith.constant 4.471500e-02 : f32
    %158 = vector.broadcast %cst_70 : f32 to vector<8x32xf32>
    %159 = arith.mulf %158, %157 : vector<8x32xf32>
    %160 = arith.addf %155, %159 : vector<8x32xf32>
    %cst_71 = arith.constant 0.797884583 : f32
    %161 = vector.broadcast %cst_71 : f32 to vector<8x32xf32>
    %162 = arith.mulf %161, %160 : vector<8x32xf32>
    %163 = math.tanh %162 : vector<8x32xf32>
    %cst_72 = arith.constant 1.000000e+00 : f32
    %164 = vector.broadcast %cst_72 : f32 to vector<8x32xf32>
    %165 = arith.addf %164, %163 : vector<8x32xf32>
    %cst_73 = arith.constant 5.000000e-01 : f32
    %166 = vector.broadcast %cst_73 : f32 to vector<8x32xf32>
    %167 = arith.mulf %166, %165 : vector<8x32xf32>
    %168 = arith.mulf %155, %167 : vector<8x32xf32>
    %cst_74 = arith.constant dense<0.000000e+00> : vector<1x8xf32>
    %169 = tpu.matmul %6, %168, %cst_74 {dimension_numbers = #tpu.dot_dimension_numbers<[1], [1], [0], [0], [0, 0, 1, 0], [], []>} : vector<1x32xf32>, vector<8x32xf32>, vector<1x8xf32> -> vector<1x8xf32>
    %170 = arith.index_cast %c6_i32 : i32 to index
    %c0_75 = arith.constant 0 : index
    %171 = vector.load %arg9[%170, %c0_75] : memref<8x8xf32, #tpu.memory_space<vmem>>, vector<1x8xf32>
    %172 = arith.addf %171, %169 : vector<1x8xf32>
    %173 = arith.index_cast %c6_i32 : i32 to index
    %c0_76 = arith.constant 0 : index
    %174 = vector.load %arg9[%173, %c0_76] : memref<8x8xf32, #tpu.memory_space<vmem>>, vector<1x8xf32>
    tpu.vector_store %arg9[%173, %c0_76], %172 {strides = array<i32>} : memref<8x8xf32, #tpu.memory_space<vmem>>, vector<1x8xf32>,
    %c7_i32 = arith.constant 7 : i32
    %c0_77 = arith.constant 0 : index
    %c0_78 = arith.constant 0 : index
    %175 = arith.index_cast %c7_i32 : i32 to index
    %c0_79 = arith.constant 0 : index
    %176 = vector.load %arg5[%c0_77, %c0_78, %175, %c0_79] : memref<1x1x8x32xf32, #tpu.memory_space<vmem>>, vector<1x1x1x32xf32>
    %177 = vector.shape_cast %176 : vector<1x1x1x32xf32> to vector<1x32xf32>
    %178 = vector.broadcast %177 : vector<1x32xf32> to vector<8x32xf32>
    %179 = arith.addf %178, %4 : vector<8x32xf32>
    %180 = arith.mulf %179, %179 : vector<8x32xf32>
    %181 = arith.mulf %179, %180 : vector<8x32xf32>
    %cst_80 = arith.constant 4.471500e-02 : f32
    %182 = vector.broadcast %cst_80 : f32 to vector<8x32xf32>
    %183 = arith.mulf %182, %181 : vector<8x32xf32>
    %184 = arith.addf %179, %183 : vector<8x32xf32>
    %cst_81 = arith.constant 0.797884583 : f32
    %185 = vector.broadcast %cst_81 : f32 to vector<8x32xf32>
    %186 = arith.mulf %185, %184 : vector<8x32xf32>
    %187 = math.tanh %186 : vector<8x32xf32>
    %cst_82 = arith.constant 1.000000e+00 : f32
    %188 = vector.broadcast %cst_82 : f32 to vector<8x32xf32>
    %189 = arith.addf %188, %187 : vector<8x32xf32>
    %cst_83 = arith.constant 5.000000e-01 : f32
    %190 = vector.broadcast %cst_83 : f32 to vector<8x32xf32>
    %191 = arith.mulf %190, %189 : vector<8x32xf32>
    %192 = arith.mulf %179, %191 : vector<8x32xf32>
    %cst_84 = arith.constant dense<0.000000e+00> : vector<1x8xf32>
    %193 = tpu.matmul %6, %192, %cst_84 {dimension_numbers = #tpu.dot_dimension_numbers<[1], [1], [0], [0], [0, 0, 1, 0], [], []>} : vector<1x32xf32>, vector<8x32xf32>, vector<1x8xf32> -> vector<1x8xf32>
    %194 = arith.index_cast %c7_i32 : i32 to index
    %c0_85 = arith.constant 0 : index
    %195 = vector.load %arg9[%194, %c0_85] : memref<8x8xf32, #tpu.memory_space<vmem>>, vector<1x8xf32>
    %196 = arith.addf %195, %193 : vector<1x8xf32>
    %197 = arith.index_cast %c7_i32 : i32 to index
    %c0_86 = arith.constant 0 : index
    %198 = vector.load %arg9[%197, %c0_86] : memref<8x8xf32, #tpu.memory_space<vmem>>, vector<1x8xf32>
    tpu.vector_store %arg9[%197, %c0_86], %196 {strides = array<i32>} : memref<8x8xf32, #tpu.memory_space<vmem>>, vector<1x8xf32>,
    %c8_i32 = arith.constant 8 : i32
    %c0_i32_87 = arith.constant 0 : i32
    %199 = arith.cmpi eq, %arg4, %c0_i32_87 : i32
    %200 = arith.extui %199 : i1 to i32
    %c0_i32_88 = arith.constant 0 : i32
    %201 = arith.cmpi ne, %200, %c0_i32_88 : i32
    scf.if %201 {
      %c0_89 = arith.constant 0 : index
      %c0_90 = arith.constant 0 : index
      %202 = vector.load %arg9[%c0_89, %c0_90] : memref<8x8xf32, #tpu.memory_space<vmem>>, vector<8x8xf32>
      %c0_91 = arith.constant 0 : index
      %c0_92 = arith.constant 0 : index
      %c0_93 = arith.constant 0 : index
      %c0_94 = arith.constant 0 : index
      %203 = vector.load %arg8[%c0_91, %c0_92, %c0_93, %c0_94] : memref<1x1x8x8xf32, #tpu.memory_space<vmem>>, vector<1x1x8x8xf32>
      %204 = vector.shape_cast %203 : vector<1x1x8x8xf32> to vector<8x8xf32>
      %205 = vector.shape_cast %202 : vector<8x8xf32> to vector<1x1x8x8xf32>
      tpu.vector_store %arg8[%c0_91, %c0_92, %c0_93, %c0_94], %205 {strides = array<i32>} : memref<1x1x8x8xf32, #tpu.memory_space<vmem>>, vector<1x1x8x8xf32>,
    } else {
    }
    return
  }
  func.func @transform_0(%arg0: i32, %arg1: i32, %arg2: i32, %arg3: i32, %arg4: i32) -> (i32, i32, i32, i32) {
    %c0_i32 = arith.constant 0 : i32
    return %arg0, %arg1, %arg2, %arg4 : i32, i32, i32, i32
  }
  func.func @transform_1(%arg0: i32, %arg1: i32, %arg2: i32, %arg3: i32, %arg4: i32) -> (i32, i32, i32, i32) {
    %c0_i32 = arith.constant 0 : i32
    return %arg0, %arg1, %arg3, %arg4 : i32, i32, i32, i32
  }
  func.func @transform_2(%arg0: i32, %arg1: i32, %arg2: i32, %arg3: i32, %arg4: i32) -> (i32, i32, i32) {
    %c0_i32 = arith.constant 0 : i32
    %c0_i32_0 = arith.constant 0 : i32
    return %arg1, %c0_i32, %arg4 : i32, i32, i32
  }
  func.func @transform_3(%arg0: i32, %arg1: i32, %arg2: i32, %arg3: i32, %arg4: i32) -> (i32, i32, i32, i32) {
    %c0_i32 = arith.constant 0 : i32
    return %arg0, %arg1, %arg2, %arg3 : i32, i32, i32, i32
  }
}

</mosaic_0001>

<llo_original>
// kernel: tpu_custom_call.1
$region0: #{tpu_custom_call.1}
  #allocation0 [shape = 'u32[]', space=smem, size = 0x4, offset = 0x4, fixed_abs, tag = 'smem constant byte address 0x4 - core index']
  #allocation1 [shape = 'u32[72,128]{1,0:T(1,128)}', space=vmem, size = 0x9000, scoped, tag = 'internal scratch']
  #allocation2 [shape = 'f32[8,8]{1,0:T(8,128)}', space=vmem, size = 0x1000, scoped, tag = 'scratch operand']
  %s0 = inlined_call_operand.hbm [shape: f32[2,4,8,32], index: 0, kind: input, shape index: {}]
  %s1 = inlined_call_operand.hbm [shape: f32[2,4,8,32], index: 1, kind: input, shape index: {}]
  %s2 = inlined_call_operand.hbm [shape: f32[4,1,32], index: 2, kind: input, shape index: {}]
  %s3 = inlined_call_operand.hbm [shape: f32[2,4,8,8], index: 3, kind: output, shape index: {}]
  %s4 = sld [smem:[#allocation0]]
  $region65: #{tpu_custom_call.1} parent=0
    _
  %s6 = ssub.s32 1, %s4
  %s7 = scalar_select 0, %s6, %s4
  $region1: #{tpu_custom_call.1} parent=0
    #allocation3 [shape = 'u8[8192]{0}', space=vmem, size = 0x2000, scoped, tag = 'input window, operand 0']
    #allocation4 [shape = 's32[2]{0}', space=sflag, size = 0x8, scoped, tag = 'scoped memory for tpu_custom_call.1']
    #allocation5 [shape = 's32[2]{0}', space=sflag, size = 0x8, scoped, tag = 'scoped memory for tpu_custom_call.1']
    #allocation6 [shape = 'u8[8192]{0}', space=vmem, size = 0x2000, scoped, tag = 'input window, operand 1']
    #allocation7 [shape = 's32[2]{0}', space=sflag, size = 0x8, scoped, tag = 'scoped memory for tpu_custom_call.1']
    #allocation8 [shape = 'u8[1024]{0}', space=vmem, size = 0x400, scoped, tag = 'input window, operand 2']
    #allocation9 [shape = 'u8[8192]{0}', space=vmem, size = 0x2000, scoped, tag = 'output window, operand 0']
    %8 = vsyncpa [#allocation4], 0
    %s9 = scalar_lea.sflag [#allocation4], 1
    %10 = vsyncpa %s9, 0
    %11 = vsyncpa [#allocation7], 0
    %s12 = scalar_lea.sflag [#allocation7], 1
    %13 = vsyncpa %s12, 0
    %14 = vsyncpa [#allocation5], 0
    %s15 = scalar_lea.sflag [#allocation5], 1
    %16 = vsyncpa %s15, 0
    loop: start=0, step=1, limit=10
    $region2: #{tpu_custom_call.1} parent=1 // loop_pre_header
      _
    $region3: #{tpu_custom_call.1} parent=1 // loop_header
      %s18 = sphi 0, %s22
      %p19 = scmp.ge.s32.totalorder %s18, 10
      %s25 = sphi 0, %s58
      %s26 = sphi 0, %s54
      %s27 = sphi 0, %s50
      %s28 = sphi 0, %s46
      %s29 = sphi 0, %s42
      %s30 = sphi 0, %s25
      %s31 = sphi 0, %s26
      %s32 = sphi 0, %s27
      %s33 = sphi 0, %s28
      %s34 = sphi 0, %s29
      %s35 = sphi 0, %s30
      %s36 = sphi 0, %s31
      %s37 = sphi 0, %s32
      %s38 = sphi 0, %s33
      %s39 = sphi 0, %s34
      %s67 = sphi 0, %s69
      %s70 = sphi 0, %s67
      %s71 = sphi 0, %s70
      %s87 = sphi 0, %s71
      %s99 = sphi 0, %s101
      %s102 = sphi 0, %s99
      %s103 = sphi 0, %s102
      %s119 = sphi 0, %s103
      %s127 = sphi 0, %s129
      %s130 = sphi 0, %s127
      %s131 = sphi 0, %s130
      %s147 = sphi 0, %s131
      %s159 = sphi 0, %s161
      %s162 = sphi 0, %s159
      %s163 = sphi 0, %s162
      %s179 = sphi 0, %s163
    $region4: #{tpu_custom_call.1} parent=1 // loop_header_branch
      %21 = sbr.rel (%p19) target = $region8
    $region5: #{tpu_custom_call.1} parent=1 // loop_body
      %s23 = ssub.s32 %s18, 1
      %s24 = ssub.s32 %s18, 2
      %s40 = sadd.s32 1, %s29
      %p41 = scmp.ge.s32.totalorder %s40, 1
      %s42 = scalar_select %p41, 0, %s40
      %s43 = sadd.s32 1, %s28
      %s44 = scalar_select %p41, %s43, %s28
      %p45 = scmp.ge.s32.totalorder %s44, 1
      %s46 = scalar_select %p45, 0, %s44
      %s47 = sadd.s32 1, %s27
      %s48 = scalar_select %p45, %s47, %s27
      %p49 = scmp.ge.s32.totalorder %s48, 1
      %s50 = scalar_select %p49, 0, %s48
      %s51 = sadd.s32 1, %s26
      %s52 = scalar_select %p49, %s51, %s26
      %p53 = scmp.ge.s32.totalorder %s52, 4
      %s54 = scalar_select %p53, 0, %s52
      %s55 = sadd.s32 1, %s25
      %s56 = scalar_select %p53, %s55, %s25
      %p57 = scmp.ge.s32.totalorder %s56, 2
      %s58 = scalar_select %p57, 0, %s56
      %s59 = ssub.s32 %s25, %s58
      %s60 = ssub.s32 %s26, %s54
      %s61 = sor.u32 %s59, %s60
      %s62 = ssub.s32 %s27, %s50
      %s63 = sor.u32 %s61, %s62
      %s64 = ssub.s32 %s29, %s42
      %s65 = sor.u32 %s63, %s64
      %p66 = scmp.eq.s32.totalorder %s65, 0
      %s68 = sadd.s32 %s67, 1
      %s69 = scalar_select %p66, %s67, %s68
      %p72 = pneg %p66
      %p73 = scmp.eq.s32.totalorder %s18, 7
      %p74 = por %p72, %p73
      %p75 = scmp.ne.s32.totalorder %s67, %s70
      %p76 = scmp.eq.s32.totalorder %s18, 0
      %p77 = por %p75, %p76
      %p78 = scmp.ne.s32.totalorder %s67, %s70
      %p79 = scmp.eq.s32.totalorder %s23, 7
      %p80 = por %p78, %p79
      %p81 = scmp.ne.s32.totalorder %s70, %s71
      %p82 = scmp.eq.s32.totalorder %s23, 0
      %p83 = por %p81, %p82
      %p84 = scmp.ne.s32.totalorder %s70, %s71
      %p85 = scmp.eq.s32.totalorder %s24, 7
      %p86 = por %p84, %p85
      %p88 = scmp.ne.s32.totalorder %s71, %s87
      %p89 = scmp.eq.s32.totalorder %s24, 0
      %p90 = por %p88, %p89
      %s91 = ssub.s32 %s25, %s58
      %s92 = ssub.s32 %s26, %s54
      %s93 = sor.u32 %s91, %s92
      %s94 = ssub.s32 %s28, %s46
      %s95 = sor.u32 %s93, %s94
      %s96 = ssub.s32 %s29, %s42
      %s97 = sor.u32 %s95, %s96
      %p98 = scmp.eq.s32.totalorder %s97, 0
      %s100 = sadd.s32 %s99, 1
      %s101 = scalar_select %p98, %s99, %s100
      %p104 = pneg %p98
      %p105 = scmp.eq.s32.totalorder %s18, 7
      %p106 = por %p104, %p105
      %p107 = scmp.ne.s32.totalorder %s99, %s102
      %p108 = scmp.eq.s32.totalorder %s18, 0
      %p109 = por %p107, %p108
      %p110 = scmp.ne.s32.totalorder %s99, %s102
      %p111 = scmp.eq.s32.totalorder %s23, 7
      %p112 = por %p110, %p111
      %p113 = scmp.ne.s32.totalorder %s102, %s103
      %p114 = scmp.eq.s32.totalorder %s23, 0
      %p115 = por %p113, %p114
      %p116 = scmp.ne.s32.totalorder %s102, %s103
      %p117 = scmp.eq.s32.totalorder %s24, 7
      %p118 = por %p116, %p117
      %p120 = scmp.ne.s32.totalorder %s103, %s119
      %p121 = scmp.eq.s32.totalorder %s24, 0
      %p122 = por %p120, %p121
      %s123 = ssub.s32 %s26, %s54
      %s124 = ssub.s32 %s29, %s42
      %s125 = sor.u32 %s123, %s124
      %p126 = scmp.eq.s32.totalorder %s125, 0
      %s128 = sadd.s32 %s127, 1
      %s129 = scalar_select %p126, %s127, %s128
      %p132 = pneg %p126
      %p133 = scmp.eq.s32.totalorder %s18, 7
      %p134 = por %p132, %p133
      %p135 = scmp.ne.s32.totalorder %s127, %s130
      %p136 = scmp.eq.s32.totalorder %s18, 0
      %p137 = por %p135, %p136
      %p138 = scmp.ne.s32.totalorder %s127, %s130
      %p139 = scmp.eq.s32.totalorder %s23, 7
      %p140 = por %p138, %p139
      %p141 = scmp.ne.s32.totalorder %s130, %s131
      %p142 = scmp.eq.s32.totalorder %s23, 0
      %p143 = por %p141, %p142
      %p144 = scmp.ne.s32.totalorder %s130, %s131
      %p145 = scmp.eq.s32.totalorder %s24, 7
      %p146 = por %p144, %p145
      %p148 = scmp.ne.s32.totalorder %s131, %s147
      %p149 = scmp.eq.s32.totalorder %s24, 0
      %p150 = por %p148, %p149
      %s151 = ssub.s32 %s25, %s58
      %s152 = ssub.s32 %s26, %s54
      %s153 = sor.u32 %s151, %s152
      %s154 = ssub.s32 %s27, %s50
      %s155 = sor.u32 %s153, %s154
      %s156 = ssub.s32 %s28, %s46
      %s157 = sor.u32 %s155, %s156
      %p158 = scmp.eq.s32.totalorder %s157, 0
      %s160 = sadd.s32 %s159, 1
      %s161 = scalar_select %p158, %s159, %s160
      %p164 = pneg %p158
      %p165 = scmp.eq.s32.totalorder %s18, 7
      %p166 = por %p164, %p165
      %p167 = scmp.ne.s32.totalorder %s159, %s162
      %p168 = scmp.eq.s32.totalorder %s18, 0
      %p169 = por %p167, %p168
      %p170 = scmp.ne.s32.totalorder %s159, %s162
      %p171 = scmp.eq.s32.totalorder %s23, 7
      %p172 = por %p170, %p171
      %p173 = scmp.ne.s32.totalorder %s162, %s163
      %p174 = scmp.eq.s32.totalorder %s23, 0
      %p175 = por %p173, %p174
      %p176 = scmp.ne.s32.totalorder %s162, %s163
      %p177 = scmp.eq.s32.totalorder %s24, 7
      %p178 = por %p176, %p177
      %p180 = scmp.ne.s32.totalorder %s163, %s179
      %p181 = scmp.eq.s32.totalorder %s24, 0
      %p182 = por %p180, %p181
      %p183 = scmp.le.s32.totalorder 1, %s18
      %p184 = scmp.lt.s32.totalorder %s18, 9
      %p185 = pnand %p183, %p184
      %p186 = pneg %p185
      // Predicated region
      $region9: #{tpu_custom_call.1} parent=5 // pred_check
        _
      $region10: #{tpu_custom_call.1} parent=5 // pred_check_branch
        %188 = sbr.rel (%p185) target = $region12
      $region11: #{tpu_custom_call.1} parent=5 // pred_region
        %s189 = ssub.s32 %s18, 1
      $region12: #{tpu_custom_call.1} parent=5 // pred_fallthru
        _
      %p190 = scmp.lt.s32.totalorder %s18, 8
      // Predicated region
      $region13: #{tpu_custom_call.1} parent=5 // pred_check
        %p191 = pneg %p190
      $region14: #{tpu_custom_call.1} parent=5 // pred_check_branch
        %193 = sbr.rel (%p191) target = $region16
      $region15: #{tpu_custom_call.1} parent=5 // pred_region
        // Predicated region
        $region17: #{tpu_custom_call.1} parent=15 // pred_check
          %p194 = pneg %p77
        $region18: #{tpu_custom_call.1} parent=15 // pred_check_branch
          %196 = sbr.rel (%p194) target = $region20
        $region19: #{tpu_custom_call.1} parent=15 // pred_region
          %s197 = sand.u32 %s67, 1
          %s198 = scalar_lea.sflag [#allocation4], %s197
          %s199 = sand.u32 %s67, 1
          %s200 = smul.addr %s199, 8
          %s201 = scalar_lea.vmem [#allocation3], %s200
          %203 = vsyncadd %s198, 0
          %s204 = sadd.s32 %s29, %s27
          %s205 = sadd.s32 %s204, %s26
          %s206 = smul.addr %s25, 4
          %s207 = sadd.s32 %s205, %s206
          %s208 = smul.addr %s207, 8
          %s209 = scalar_lea.hbm %s0, %s208
          %s211 = sshll.u32 %s209, 4
          %s212 = int_to_ptr.hbm [resolvable:$true] %s211
          %s213 = sshll.u32 %s201, 4
          %s214 = int_to_ptr.vmem [resolvable:$true] %s213
          %216 = dma.hbm_to_vmem [thread:$0]  %s212, 128, %s214, %s198
        $region20: #{tpu_custom_call.1} parent=15 // pred_fallthru
          _
        // Predicated region
        $region21: #{tpu_custom_call.1} parent=15 // pred_check
          %p217 = pneg %p109
        $region22: #{tpu_custom_call.1} parent=15 // pred_check_branch
          %219 = sbr.rel (%p217) target = $region24
        $region23: #{tpu_custom_call.1} parent=15 // pred_region
          %s220 = sand.u32 %s18, 1
          %s221 = scalar_lea.sflag [#allocation7], %s220
          %s222 = sand.u32 %s99, 1
          %s223 = smul.addr %s222, 8
          %s224 = scalar_lea.vmem [#allocation6], %s223
          %226 = vsyncadd %s221, 0
          %s227 = sadd.s32 %s29, %s28
          %s228 = sadd.s32 %s227, %s26
          %s229 = smul.addr %s25, 4
          %s230 = sadd.s32 %s228, %s229
          %s231 = smul.addr %s230, 8
          %s232 = scalar_lea.hbm %s1, %s231
          %s234 = sshll.u32 %s232, 4
          %s235 = int_to_ptr.hbm [resolvable:$true] %s234
          %s236 = sshll.u32 %s224, 4
          %s237 = int_to_ptr.vmem [resolvable:$true] %s236
          %239 = dma.hbm_to_vmem [thread:$0]  %s235, 128, %s237, %s221
        $region24: #{tpu_custom_call.1} parent=15 // pred_fallthru
          _
        // Predicated region
        $region25: #{tpu_custom_call.1} parent=15 // pred_check
          %p240 = pneg %p137
        $region26: #{tpu_custom_call.1} parent=15 // pred_check_branch
          %242 = sbr.rel (%p240) target = $region28
        $region27: #{tpu_custom_call.1} parent=15 // pred_region
          %s243 = sand.u32 %s18, 1
          %s244 = scalar_lea.sflag [#allocation7], %s243
          %s245 = sand.u32 %s127, 1
          %s246 = scalar_lea.vmem [#allocation8], %s245
          %248 = vsyncadd %s244, 0
          %s249 = sadd.s32 %s29, %s26
          %s250 = scalar_lea.hbm %s2, %s249
          %s252 = sshll.u32 %s250, 4
          %s253 = int_to_ptr.hbm [resolvable:$true] %s252
          %s254 = sshll.u32 %s246, 4
          %s255 = int_to_ptr.vmem [resolvable:$true] %s254
          %257 = dma.hbm_to_vmem [thread:$0]  %s253, 16, %s255, %s244
        $region28: #{tpu_custom_call.1} parent=15 // pred_fallthru
          _
      $region16: #{tpu_custom_call.1} parent=5 // pred_fallthru
        _
      %p258 = scmp.le.s32.totalorder 1, %s18
      %p259 = scmp.lt.s32.totalorder %s18, 9
      %p260 = pnand %p258, %p259
      %p261 = pneg %p260
      // Predicated region
      $region29: #{tpu_custom_call.1} parent=5 // pred_check
        _
      $region30: #{tpu_custom_call.1} parent=5 // pred_check_branch
        %263 = sbr.rel (%p260) target = $region32
      $region31: #{tpu_custom_call.1} parent=5 // pred_region
        %s264 = ssub.s32 %s18, 1
        %s265 = sand.u32 %s70, 1
        %s266 = scalar_lea.sflag [#allocation4], %s265
        %s267 = sand.u32 %s70, 1
        %s268 = smul.addr %s267, 8
        %s269 = scalar_lea.vmem [#allocation3], %s268
        // Predicated region
        $region33: #{tpu_custom_call.1} parent=31 // pred_check
          %p270 = pneg %p83
        $region34: #{tpu_custom_call.1} parent=31 // pred_check_branch
          %272 = sbr.rel (%p270) target = $region36
        $region35: #{tpu_custom_call.1} parent=31 // pred_region
          %274 = dma.done %s266, 128
        $region36: #{tpu_custom_call.1} parent=31 // pred_fallthru
          _
        %s275 = sand.u32 %s23, 1
        %s276 = scalar_lea.sflag [#allocation7], %s275
        %s277 = sand.u32 %s102, 1
        %s278 = smul.addr %s277, 8
        %s279 = scalar_lea.vmem [#allocation6], %s278
        // Predicated region
        $region37: #{tpu_custom_call.1} parent=31 // pred_check
          %p280 = pneg %p115
        $region38: #{tpu_custom_call.1} parent=31 // pred_check_branch
          %282 = sbr.rel (%p280) target = $region40
        $region39: #{tpu_custom_call.1} parent=31 // pred_region
          %284 = dma.done %s276, 128
        $region40: #{tpu_custom_call.1} parent=31 // pred_fallthru
          _
        %s285 = sand.u32 %s23, 1
        %s286 = scalar_lea.sflag [#allocation7], %s285
        %s287 = sand.u32 %s130, 1
        %s288 = scalar_lea.vmem [#allocation8], %s287
        // Predicated region
        $region41: #{tpu_custom_call.1} parent=31 // pred_check
          %p289 = pneg %p143
        $region42: #{tpu_custom_call.1} parent=31 // pred_check_branch
          %291 = sbr.rel (%p289) target = $region44
        $region43: #{tpu_custom_call.1} parent=31 // pred_region
          %293 = dma.done %s286, 16
        $region44: #{tpu_custom_call.1} parent=31 // pred_fallthru
          _
        %s294 = sand.u32 %s70, 1
        %s295 = scalar_lea.sflag [#allocation4], %s294
        %s296 = sand.u32 %s70, 1
        %s297 = smul.addr %s296, 8
        %s298 = scalar_lea.vmem [#allocation3], %s297
        %p299 = pneg %p83
        %p300 = pneg %p80
        %s301 = sand.u32 %s23, 1
        %s302 = scalar_lea.sflag [#allocation7], %s301
        %s303 = sand.u32 %s102, 1
        %s304 = smul.addr %s303, 8
        %s305 = scalar_lea.vmem [#allocation6], %s304
        %p306 = pneg %p115
        %p307 = pneg %p112
        %s308 = sand.u32 %s23, 1
        %s309 = scalar_lea.sflag [#allocation7], %s308
        %s310 = sand.u32 %s130, 1
        %s311 = scalar_lea.vmem [#allocation8], %s310
        %p312 = pneg %p143
        %p313 = pneg %p140
        %p314 = pneg %p175
        %p315 = pneg %p172
        %s316 = sand.u32 %s162, 1
        %s317 = scalar_lea.sflag [#allocation5], %s316
        %s318 = sand.u32 %s162, 1
        %s319 = smul.addr %s318, 8
        %s320 = scalar_lea.vmem [#allocation9], %s319
        %p321 = scmp.eq.s32.totalorder %s34, 0
        // Predicated region
        $region45: #{tpu_custom_call.1} parent=31 // pred_check
          %p322 = pneg %p321
        $region46: #{tpu_custom_call.1} parent=31 // pred_check_branch
          %324 = sbr.rel (%p322) target = $region48
        $region47: #{tpu_custom_call.1} parent=31 // pred_region
          %vm325 = vcmask 64512
          %326 = vst.msk [vmem:[#allocation2] sm:$0xff] %vm325, 0.0
        $region48: #{tpu_custom_call.1} parent=31 // pred_fallthru
          _
        %v327 = vld [vmem:[%s279] sm:$0xff]
        %v328 = vld [vmem:[%s288] sm:$0x1]
        %v329 = vld [vmem:[%s269] sm:$0x1]
        %v330 = vperm.slane %v329, 0
        %v331 = vadd.f32 %v330, %v327
        %v332 = vmul.f32 %v331, %v331
        %v333 = vmul.f32 %v331, %v332
        %v334 = vmul.f32 %v333, 0.044715
        %v335 = vadd.f32 %v331, %v334
        %v336 = vmul.f32 %v335, 0.7978846
        %v337 = vtanh.pop %v336
        %v338 = vadd.f32 %v337, 1.0
        %v339 = vmul.f32 %v338, 0.5
        %v340 = vmul.f32 %v331, %v339
        %vm341 = vcmask 261120
        %v343 = vsel %vm341, %v328, 0
        %v346 = vsel %vm341, %v340, 0
        %348 = vmatpush.xpose.msra.mxu0 0.0
        %349 = vmatpush.xpose.msra.mxu0 0.0
        %350 = vmatpush.xpose.msra.mxu0 0.0
        %351 = vmatpush.xpose.msra.mxu0 0.0
        %352 = vmatpush.xpose.msra.mxu0 0.0
        %353 = vmatpush.xpose.msra.mxu0 0.0
        %354 = vmatpush.xpose.msra.mxu0 0.0
        %355 = vmatpush.xpose.msra.mxu0 0.0
        %356 = vmatpush.xpose.msra.mxu0 0.0
        %357 = vmatpush.xpose.msra.mxu0 0.0
        %358 = vmatpush.xpose.msra.mxu0 0.0
        %359 = vmatpush.xpose.msra.mxu0 0.0
        %360 = vmatpush.xpose.msra.mxu0 0.0
        %361 = vmatpush.xpose.msra.mxu0 0.0
        %362 = vmatpush.xpose.msra.mxu0 0.0
        %363 = vmatpush.xpose.msra.mxu0 %v346
        %364 = vmatmul.f32.gmra.mxu0 %v343
        %v365 = vpop.f32.mrf.mxu0
        %v366 = vadd.f32 0.0, %v365
        %367 = vdwg.mxu0
        %v368 = vld [vmem:[#allocation2] sm:$0x1]
        %v369 = vadd.f32 %v368, %v366
        %vm370 = vcmask 57344
        %371 = vst.msk [vmem:[#allocation2] sm:$0x1] %vm370, %v369
        %v372 = vld [vmem:[%s269 + $0x1] sm:$0x1]
        %v373 = vperm.slane %v372, 0
        %v374 = vadd.f32 %v373, %v327
        %v375 = vmul.f32 %v374, %v374
        %v376 = vmul.f32 %v374, %v375
        %v377 = vmul.f32 %v376, 0.044715
        %v378 = vadd.f32 %v374, %v377
        %v379 = vmul.f32 %v378, 0.7978846
        %v380 = vtanh.pop %v379
        %v381 = vadd.f32 %v380, 1.0
        %v382 = vmul.f32 %v381, 0.5
        %v383 = vmul.f32 %v374, %v382
        %v385 = vsel %vm341, %v383, 0
        %387 = vmatpush.xpose.msra.mxu0 0.0
        %388 = vmatpush.xpose.msra.mxu0 0.0
        %389 = vmatpush.xpose.msra.mxu0 0.0
        %390 = vmatpush.xpose.msra.mxu0 0.0
        %391 = vmatpush.xpose.msra.mxu0 0.0
        %392 = vmatpush.xpose.msra.mxu0 0.0
        %393 = vmatpush.xpose.msra.mxu0 0.0
        %394 = vmatpush.xpose.msra.mxu0 0.0
        %395 = vmatpush.xpose.msra.mxu0 0.0
        %396 = vmatpush.xpose.msra.mxu0 0.0
        %397 = vmatpush.xpose.msra.mxu0 0.0
        %398 = vmatpush.xpose.msra.mxu0 0.0
        %399 = vmatpush.xpose.msra.mxu0 0.0
        %400 = vmatpush.xpose.msra.mxu0 0.0
        %401 = vmatpush.xpose.msra.mxu0 0.0
        %402 = vmatpush.xpose.msra.mxu0 %v385
        %403 = vmatmul.f32.gmra.mxu0 %v343
        %v404 = vpop.f32.mrf.mxu0
        %v405 = vadd.f32 0.0, %v404
        %406 = vdwg.mxu0
        %v407 = vld [vmem:[#allocation2 + $0x1] sm:$0x1]
        %v408 = vadd.f32 %v407, %v405
        %409 = vst.msk [vmem:[#allocation2 + $0x1] sm:$0x1] %vm370, %v408
        %v410 = vld [vmem:[%s269 + $0x2] sm:$0x1]
        %v411 = vperm.slane %v410, 0
        %v412 = vadd.f32 %v411, %v327
        %v413 = vmul.f32 %v412, %v412
        %v414 = vmul.f32 %v412, %v413
        %v415 = vmul.f32 %v414, 0.044715
        %v416 = vadd.f32 %v412, %v415
        %v417 = vmul.f32 %v416, 0.7978846
        %v418 = vtanh.pop %v417
        %v419 = vadd.f32 %v418, 1.0
        %v420 = vmul.f32 %v419, 0.5
        %v421 = vmul.f32 %v412, %v420
        %v423 = vsel %vm341, %v421, 0
        %425 = vmatpush.xpose.msra.mxu0 0.0
        %426 = vmatpush.xpose.msra.mxu0 0.0
        %427 = vmatpush.xpose.msra.mxu0 0.0
        %428 = vmatpush.xpose.msra.mxu0 0.0
        %429 = vmatpush.xpose.msra.mxu0 0.0
        %430 = vmatpush.xpose.msra.mxu0 0.0
        %431 = vmatpush.xpose.msra.mxu0 0.0
        %432 = vmatpush.xpose.msra.mxu0 0.0
        %433 = vmatpush.xpose.msra.mxu0 0.0
        %434 = vmatpush.xpose.msra.mxu0 0.0
        %435 = vmatpush.xpose.msra.mxu0 0.0
        %436 = vmatpush.xpose.msra.mxu0 0.0
        %437 = vmatpush.xpose.msra.mxu0 0.0
        %438 = vmatpush.xpose.msra.mxu0 0.0
        %439 = vmatpush.xpose.msra.mxu0 0.0
        %440 = vmatpush.xpose.msra.mxu0 %v423
        %441 = vmatmul.f32.gmra.mxu0 %v343
        %v442 = vpop.f32.mrf.mxu0
        %v443 = vadd.f32 0.0, %v442
        %444 = vdwg.mxu0
        %v445 = vld [vmem:[#allocation2 + $0x2] sm:$0x1]
        %v446 = vadd.f32 %v445, %v443
        %447 = vst.msk [vmem:[#allocation2 + $0x2] sm:$0x1] %vm370, %v446
        %v448 = vld [vmem:[%s269 + $0x3] sm:$0x1]
        %v449 = vperm.slane %v448, 0
        %v450 = vadd.f32 %v449, %v327
        %v451 = vmul.f32 %v450, %v450
        %v452 = vmul.f32 %v450, %v451
        %v453 = vmul.f32 %v452, 0.044715
        %v454 = vadd.f32 %v450, %v453
        %v455 = vmul.f32 %v454, 0.7978846
        %v456 = vtanh.pop %v455
        %v457 = vadd.f32 %v456, 1.0
        %v458 = vmul.f32 %v457, 0.5
        %v459 = vmul.f32 %v450, %v458
        %v461 = vsel %vm341, %v459, 0
        %463 = vmatpush.xpose.msra.mxu0 0.0
        %464 = vmatpush.xpose.msra.mxu0 0.0
        %465 = vmatpush.xpose.msra.mxu0 0.0
        %466 = vmatpush.xpose.msra.mxu0 0.0
        %467 = vmatpush.xpose.msra.mxu0 0.0
        %468 = vmatpush.xpose.msra.mxu0 0.0
        %469 = vmatpush.xpose.msra.mxu0 0.0
        %470 = vmatpush.xpose.msra.mxu0 0.0
        %471 = vmatpush.xpose.msra.mxu0 0.0
        %472 = vmatpush.xpose.msra.mxu0 0.0
        %473 = vmatpush.xpose.msra.mxu0 0.0
        %474 = vmatpush.xpose.msra.mxu0 0.0
        %475 = vmatpush.xpose.msra.mxu0 0.0
        %476 = vmatpush.xpose.msra.mxu0 0.0
        %477 = vmatpush.xpose.msra.mxu0 0.0
        %478 = vmatpush.xpose.msra.mxu0 %v461
        %479 = vmatmul.f32.gmra.mxu0 %v343
        %v480 = vpop.f32.mrf.mxu0
        %v481 = vadd.f32 0.0, %v480
        %482 = vdwg.mxu0
        %v483 = vld [vmem:[#allocation2 + $0x3] sm:$0x1]
        %v484 = vadd.f32 %v483, %v481
        %485 = vst.msk [vmem:[#allocation2 + $0x3] sm:$0x1] %vm370, %v484
        %v486 = vld [vmem:[%s269 + $0x4] sm:$0x1]
        %v487 = vperm.slane %v486, 0
        %v488 = vadd.f32 %v487, %v327
        %v489 = vmul.f32 %v488, %v488
        %v490 = vmul.f32 %v488, %v489
        %v491 = vmul.f32 %v490, 0.044715
        %v492 = vadd.f32 %v488, %v491
        %v493 = vmul.f32 %v492, 0.7978846
        %v494 = vtanh.pop %v493
        %v495 = vadd.f32 %v494, 1.0
        %v496 = vmul.f32 %v495, 0.5
        %v497 = vmul.f32 %v488, %v496
        %v499 = vsel %vm341, %v497, 0
        %501 = vmatpush.xpose.msra.mxu0 0.0
        %502 = vmatpush.xpose.msra.mxu0 0.0
        %503 = vmatpush.xpose.msra.mxu0 0.0
        %504 = vmatpush.xpose.msra.mxu0 0.0
        %505 = vmatpush.xpose.msra.mxu0 0.0
        %506 = vmatpush.xpose.msra.mxu0 0.0
        %507 = vmatpush.xpose.msra.mxu0 0.0
        %508 = vmatpush.xpose.msra.mxu0 0.0
        %509 = vmatpush.xpose.msra.mxu0 0.0
        %510 = vmatpush.xpose.msra.mxu0 0.0
        %511 = vmatpush.xpose.msra.mxu0 0.0
        %512 = vmatpush.xpose.msra.mxu0 0.0
        %513 = vmatpush.xpose.msra.mxu0 0.0
        %514 = vmatpush.xpose.msra.mxu0 0.0
        %515 = vmatpush.xpose.msra.mxu0 0.0
        %516 = vmatpush.xpose.msra.mxu0 %v499
        %517 = vmatmul.f32.gmra.mxu0 %v343
        %v518 = vpop.f32.mrf.mxu0
        %v519 = vadd.f32 0.0, %v518
        %520 = vdwg.mxu0
        %v521 = vld [vmem:[#allocation2 + $0x4] sm:$0x1]
        %v522 = vadd.f32 %v521, %v519
        %523 = vst.msk [vmem:[#allocation2 + $0x4] sm:$0x1] %vm370, %v522
        %v524 = vld [vmem:[%s269 + $0x5] sm:$0x1]
        %v525 = vperm.slane %v524, 0
        %v526 = vadd.f32 %v525, %v327
        %v527 = vmul.f32 %v526, %v526
        %v528 = vmul.f32 %v526, %v527
        %v529 = vmul.f32 %v528, 0.044715
        %v530 = vadd.f32 %v526, %v529
        %v531 = vmul.f32 %v530, 0.7978846
        %v532 = vtanh.pop %v531
        %v533 = vadd.f32 %v532, 1.0
        %v534 = vmul.f32 %v533, 0.5
        %v535 = vmul.f32 %v526, %v534
        %v537 = vsel %vm341, %v535, 0
        %539 = vmatpush.xpose.msra.mxu0 0.0
        %540 = vmatpush.xpose.msra.mxu0 0.0
        %541 = vmatpush.xpose.msra.mxu0 0.0
        %542 = vmatpush.xpose.msra.mxu0 0.0
        %543 = vmatpush.xpose.msra.mxu0 0.0
        %544 = vmatpush.xpose.msra.mxu0 0.0
        %545 = vmatpush.xpose.msra.mxu0 0.0
        %546 = vmatpush.xpose.msra.mxu0 0.0
        %547 = vmatpush.xpose.msra.mxu0 0.0
        %548 = vmatpush.xpose.msra.mxu0 0.0
        %549 = vmatpush.xpose.msra.mxu0 0.0
        %550 = vmatpush.xpose.msra.mxu0 0.0
        %551 = vmatpush.xpose.msra.mxu0 0.0
        %552 = vmatpush.xpose.msra.mxu0 0.0
        %553 = vmatpush.xpose.msra.mxu0 0.0
        %554 = vmatpush.xpose.msra.mxu0 %v537
        %555 = vmatmul.f32.gmra.mxu0 %v343
        %v556 = vpop.f32.mrf.mxu0
        %v557 = vadd.f32 0.0, %v556
        %558 = vdwg.mxu0
        %v559 = vld [vmem:[#allocation2 + $0x5] sm:$0x1]
        %v560 = vadd.f32 %v559, %v557
        %561 = vst.msk [vmem:[#allocation2 + $0x5] sm:$0x1] %vm370, %v560
        %v562 = vld [vmem:[%s269 + $0x6] sm:$0x1]
        %v563 = vperm.slane %v562, 0
        %v564 = vadd.f32 %v563, %v327
        %v565 = vmul.f32 %v564, %v564
        %v566 = vmul.f32 %v564, %v565
        %v567 = vmul.f32 %v566, 0.044715
        %v568 = vadd.f32 %v564, %v567
        %v569 = vmul.f32 %v568, 0.7978846
        %v570 = vtanh.pop %v569
        %v571 = vadd.f32 %v570, 1.0
        %v572 = vmul.f32 %v571, 0.5
        %v573 = vmul.f32 %v564, %v572
        %v575 = vsel %vm341, %v573, 0
        %577 = vmatpush.xpose.msra.mxu0 0.0
        %578 = vmatpush.xpose.msra.mxu0 0.0
        %579 = vmatpush.xpose.msra.mxu0 0.0
        %580 = vmatpush.xpose.msra.mxu0 0.0
        %581 = vmatpush.xpose.msra.mxu0 0.0
        %582 = vmatpush.xpose.msra.mxu0 0.0
        %583 = vmatpush.xpose.msra.mxu0 0.0
        %584 = vmatpush.xpose.msra.mxu0 0.0
        %585 = vmatpush.xpose.msra.mxu0 0.0
        %586 = vmatpush.xpose.msra.mxu0 0.0
        %587 = vmatpush.xpose.msra.mxu0 0.0
        %588 = vmatpush.xpose.msra.mxu0 0.0
        %589 = vmatpush.xpose.msra.mxu0 0.0
        %590 = vmatpush.xpose.msra.mxu0 0.0
        %591 = vmatpush.xpose.msra.mxu0 0.0
        %592 = vmatpush.xpose.msra.mxu0 %v575
        %593 = vmatmul.f32.gmra.mxu0 %v343
        %v594 = vpop.f32.mrf.mxu0
        %v595 = vadd.f32 0.0, %v594
        %596 = vdwg.mxu0
        %v597 = vld [vmem:[#allocation2 + $0x6] sm:$0x1]
        %v598 = vadd.f32 %v597, %v595
        %599 = vst.msk [vmem:[#allocation2 + $0x6] sm:$0x1] %vm370, %v598
        %v600 = vld [vmem:[%s269 + $0x7] sm:$0x1]
        %v601 = vperm.slane %v600, 0
        %v602 = vadd.f32 %v601, %v327
        %v603 = vmul.f32 %v602, %v602
        %v604 = vmul.f32 %v602, %v603
        %v605 = vmul.f32 %v604, 0.044715
        %v606 = vadd.f32 %v602, %v605
        %v607 = vmul.f32 %v606, 0.7978846
        %v608 = vtanh.pop %v607
        %v609 = vadd.f32 %v608, 1.0
        %v610 = vmul.f32 %v609, 0.5
        %v611 = vmul.f32 %v602, %v610
        %v613 = vsel %vm341, %v611, 0
        %615 = vmatpush.xpose.msra.mxu0 0.0
        %616 = vmatpush.xpose.msra.mxu0 0.0
        %617 = vmatpush.xpose.msra.mxu0 0.0
        %618 = vmatpush.xpose.msra.mxu0 0.0
        %619 = vmatpush.xpose.msra.mxu0 0.0
        %620 = vmatpush.xpose.msra.mxu0 0.0
        %621 = vmatpush.xpose.msra.mxu0 0.0
        %622 = vmatpush.xpose.msra.mxu0 0.0
        %623 = vmatpush.xpose.msra.mxu0 0.0
        %624 = vmatpush.xpose.msra.mxu0 0.0
        %625 = vmatpush.xpose.msra.mxu0 0.0
        %626 = vmatpush.xpose.msra.mxu0 0.0
        %627 = vmatpush.xpose.msra.mxu0 0.0
        %628 = vmatpush.xpose.msra.mxu0 0.0
        %629 = vmatpush.xpose.msra.mxu0 0.0
        %630 = vmatpush.xpose.msra.mxu0 %v613
        %631 = vmatmul.f32.gmra.mxu0 %v343
        %v632 = vpop.f32.mrf.mxu0
        %v633 = vadd.f32 0.0, %v632
        %634 = vdwg.mxu0
        %v635 = vld [vmem:[#allocation2 + $0x7] sm:$0x1]
        %v636 = vadd.f32 %v635, %v633
        %637 = vst.msk [vmem:[#allocation2 + $0x7] sm:$0x1] %vm370, %v636
        // Predicated region
        $region49: #{tpu_custom_call.1} parent=31 // pred_check
          %p638 = pneg %p321
        $region50: #{tpu_custom_call.1} parent=31 // pred_check_branch
          %640 = sbr.rel (%p638) target = $region52
        $region51: #{tpu_custom_call.1} parent=31 // pred_region
          %v641 = vld [vmem:[#allocation2] sm:$0xff]
          %vm642 = vcmask 64512
          %643 = vst.msk [vmem:[%s320] sm:$0xff] %vm642, %v641
        $region52: #{tpu_custom_call.1} parent=31 // pred_fallthru
          _
        %s644 = sand.u32 %s162, 1
        %s645 = scalar_lea.sflag [#allocation5], %s644
        %s646 = sand.u32 %s162, 1
        %s647 = smul.addr %s646, 8
        %s648 = scalar_lea.vmem [#allocation9], %s647
        // Predicated region
        $region53: #{tpu_custom_call.1} parent=31 // pred_check
          %p649 = pneg %p172
        $region54: #{tpu_custom_call.1} parent=31 // pred_check_branch
          %651 = sbr.rel (%p649) target = $region56
        $region55: #{tpu_custom_call.1} parent=31 // pred_region
          %653 = vsyncadd %s645, 0
          %s654 = sadd.s32 %s33, %s32
          %s655 = sadd.s32 %s654, %s31
          %s656 = smul.addr %s30, 4
          %s657 = sadd.s32 %s655, %s656
          %s658 = smul.addr %s657, 8
          %s659 = scalar_lea.hbm %s3, %s658
          %s661 = sshll.u32 %s648, 4
          %s662 = int_to_ptr.vmem [resolvable:$true] %s661
          %s663 = sshll.u32 %s659, 4
          %s664 = int_to_ptr.hbm [resolvable:$true] %s663
          %666 = dma.vmem_to_hbm [thread:$0]  %s662, 128, %s664, %s645
        $region56: #{tpu_custom_call.1} parent=31 // pred_fallthru
          _
      $region32: #{tpu_custom_call.1} parent=5 // pred_fallthru
        _
      %p667 = scmp.le.s32.totalorder 2, %s18
      // Predicated region
      $region57: #{tpu_custom_call.1} parent=5 // pred_check
        %p668 = pneg %p667
      $region58: #{tpu_custom_call.1} parent=5 // pred_check_branch
        %670 = sbr.rel (%p668) target = $region60
      $region59: #{tpu_custom_call.1} parent=5 // pred_region
        %s671 = ssub.s32 %s18, 2
        // Predicated region
        $region61: #{tpu_custom_call.1} parent=59 // pred_check
          %p672 = pneg %p178
        $region62: #{tpu_custom_call.1} parent=59 // pred_check_branch
          %674 = sbr.rel (%p672) target = $region64
        $region63: #{tpu_custom_call.1} parent=59 // pred_region
          %s675 = sand.u32 %s163, 1
          %s676 = scalar_lea.sflag [#allocation5], %s675
          %s677 = sand.u32 %s163, 1
          %s678 = smul.addr %s677, 8
          %s679 = scalar_lea.vmem [#allocation9], %s678
          %681 = dma.done %s676, 128
        $region64: #{tpu_custom_call.1} parent=59 // pred_fallthru
          _
      $region60: #{tpu_custom_call.1} parent=5 // pred_fallthru
        _
    $region6: #{tpu_custom_call.1} parent=1 // loop_footer
      %s22 = sadd.s32 1, %s18
    $region7: #{tpu_custom_call.1} parent=1 // loop_footer_branch
      %17 = sbr.rel target = $region3
    $region8: #{tpu_custom_call.1} parent=1 // loop_exit
      _
    %682 = vsyncpa [#allocation4], 1
    %s683 = scalar_lea.sflag [#allocation4], 1
    %684 = vsyncpa %s683, 1
    %685 = vsyncpa [#allocation7], 1
    %s686 = scalar_lea.sflag [#allocation7], 1
    %687 = vsyncpa %s686, 1
    %688 = vsyncpa [#allocation5], 1
    %s689 = scalar_lea.sflag [#allocation5], 1
    %690 = vsyncpa %s689, 1

</llo_original>
